<compile_context>
chip_gen: v7x
topology: tpu7x:2x2x1
jax: 0.10.0
libtpu: 0.0.40
codegen_flags: <defaults>
</compile_context>

<pallas_src>
import jax
import jax.numpy as jnp
from jax.experimental import pallas as pl
from jax.experimental.pallas import tpu as pltpu

_LANES = 1024                      # lane-dense slab width: 8 x 128 lanes
_TARGET_TILE_BYTES = 2 * 1024 * 1024  # ~2 MiB per input tile


def _round_up(x, m):
    return (x + m - 1) // m * m


def _rho_connection_kernel(rho_ref, yl_ref, yh_ref, out_ref):
    # rho_ref lives in SMEM as a (1,) f32 scalar; yl/yh/out are VMEM tiles.
    rho = rho_ref[0]
    yl = yl_ref[...].astype(jnp.float32)
    yh = yh_ref[...].astype(jnp.float32)
    out_ref[...] = (yh - yl * rho).astype(out_ref.dtype)


@jax.jit
def rho_connection_forward(yl, yh, rho):
    """res = yh - yl * rho, elementwise.

    yl, yh: arbitrary (matching) shapes, e.g. NCHW (B, C, H, W).
    rho: scalar parameter (kept in float32).
    """
    assert yl.shape == yh.shape and yl.dtype == yh.dtype
    orig_shape = yl.shape
    out_dtype = yl.dtype
    total = yl.size
    itemsize = jnp.dtype(out_dtype).itemsize

    lanes = _LANES
    # Sublane packing granularity: 8 rows for 4-byte, 16 for 2-byte, 32 for 1-byte.
    sub = max(8, 32 // itemsize)
    # Dtype-aware target tile: ~2 MiB per input, rows a multiple of `sub`.
    target_rows = max(sub, (_TARGET_TILE_BYTES // (lanes * itemsize)) // sub * sub)

    # Pad the flattened slab only to the minimum tile granularity (sub*lanes),
    # then reshape to a lane-dense 2D slab.  The last (possibly partial) row
    # block is handled by Pallas' out-of-bounds masking via a cdiv grid, so no
    # full-block padding (and the extra HBM copy it implies) is needed.
    granule = sub * lanes
    padded_total = _round_up(total, granule)
    pad = padded_total - total
    rows = padded_total // lanes                  # multiple of `sub`
    block_rows = min(target_rows, rows)           # multiple of `sub`
    grid = (pl.cdiv(rows, block_rows),)

    yl_flat = yl.reshape(-1)
    yh_flat = yh.reshape(-1)
    if pad:
        yl_flat = jnp.pad(yl_flat, (0, pad))
        yh_flat = jnp.pad(yh_flat, (0, pad))
    yl2 = yl_flat.reshape(rows, lanes)
    yh2 = yh_flat.reshape(rows, lanes)
    rho_arr = jnp.asarray(rho, dtype=jnp.float32).reshape(1)

    cost = pl.CostEstimate(
        flops=2 * total,
        transcendentals=0,
        bytes_accessed=3 * total * itemsize,
    )

    out2 = pl.pallas_call(
        _rho_connection_kernel,
        out_shape=jax.ShapeDtypeStruct((rows, lanes), out_dtype),
        grid_spec=pltpu.PrefetchScalarGridSpec(
            num_scalar_prefetch=0,
            grid=grid,
            in_specs=[
                pl.BlockSpec(memory_space=pltpu.SMEM),                 # rho scalar
                pl.BlockSpec((block_rows, lanes), lambda i: (i, 0)),   # yl tile
                pl.BlockSpec((block_rows, lanes), lambda i: (i, 0)),   # yh tile
            ],
            out_specs=pl.BlockSpec((block_rows, lanes), lambda i: (i, 0)),
        ),
        compiler_params=pltpu.CompilerParams(
            dimension_semantics=("parallel",),
            vmem_limit_bytes=32 * 1024 * 1024,
        ),
        cost_estimate=cost,
    )(rho_arr, yl2, yh2)

    out_flat = out2.reshape(-1)
    if pad:
        out_flat = out_flat[:total]
    return out_flat.reshape(orig_shape)


class RhoConnection:
    """JAX mirror of the PyTorch rho_connection module (forward on TPU)."""

    def __init__(self, rho=1.0, trainable=True):
        self.trainable = trainable
        # Deterministic parameter initialization (matches torch.tensor(rho)).
        self.rho = jnp.float32(rho)

    def forward(self, yl, yh):
        return rho_connection_forward(yl, yh, self.rho)

    # Plain-JAX helpers (not part of the hot forward path).
    def low_2_high(self, yl, res):
        return yl * self.rho + res

    def low_2_high_double_mapping(self, yl_var, res):
        return yl_var * self.rho + res

    def high_2_low(self, yh, res):
        return (yh - res) / self.rho

    # TODO(synk): get_param/set_param/get_params_need_check are PyTorch
    # optimizer bookkeeping with no Pallas equivalent; omitted.


if __name__ == "__main__":
    key = jax.random.PRNGKey(0)
    k1, k2, k3, k4 = jax.random.split(key, 4)

    module = RhoConnection(rho=1.5, trainable=True)

    # Small NCHW inputs: batch=2, channels=4, spatial=16x16 -> 2048 elements.
    yl = jax.random.normal(k1, (2, 4, 16, 16), dtype=jnp.float32)
    yh = jax.random.normal(k2, (2, 4, 16, 16), dtype=jnp.float32)
    res = jax.block_until_ready(module.forward(yl, yh))
    ref = yh - yl * module.rho
    assert res.shape == yl.shape
    assert jnp.allclose(res, ref, atol=1e-6, rtol=1e-6)

    # Awkward, non-128-divisible shape exercises the padding / masking path.
    yl2 = jax.random.normal(k3, (3, 5, 7, 11), dtype=jnp.float32)
    yh2 = jax.random.normal(k4, (3, 5, 7, 11), dtype=jnp.float32)
    res2 = jax.block_until_ready(module.forward(yl2, yh2))
    ref2 = yh2 - yl2 * module.rho
    assert res2.shape == yl2.shape
    assert jnp.allclose(res2, ref2, atol=1e-6, rtol=1e-6)

    print("KERNEL_OK")
</pallas_src>

<mosaic_0001>
module attributes {stable_mosaic.version = 11 : i64} {
  func.func @_rho_connection_kernel(%arg0: i32, %arg1: memref<1xf32, #tpu.memory_space<smem>>, %arg2: memref<8x1024xf32, #tpu.memory_space<vmem>>, %arg3: memref<8x1024xf32, #tpu.memory_space<vmem>>, %arg4: memref<8x1024xf32, #tpu.memory_space<vmem>>) attributes {dimension_semantics = [#tpu.dimension_semantics<parallel>], iteration_bounds = array<i64: 1>, scalar_prefetch = 0 : i64, scratch_operands = 0 : i64, tpu.core_type = #tpu.core_type<tc>, window_params = [{transform_indices = @transform_0, window_bounds = array<i64: 1>}, {transform_indices = @transform_1, window_bounds = array<i64: 8, 1024>}, {transform_indices = @transform_2, window_bounds = array<i64: 8, 1024>}, {transform_indices = @transform_3, window_bounds = array<i64: 8, 1024>}]} {
    %c0 = arith.constant 0 : index
    %0 = memref.load %arg1[%c0] : memref<1xf32, #tpu.memory_space<smem>>
    %c0_0 = arith.constant 0 : index
    %c0_1 = arith.constant 0 : index
    %1 = vector.load %arg2[%c0_0, %c0_1] : memref<8x1024xf32, #tpu.memory_space<vmem>>, vector<8x1024xf32>
    %c0_2 = arith.constant 0 : index
    %c0_3 = arith.constant 0 : index
    %2 = vector.load %arg3[%c0_2, %c0_3] : memref<8x1024xf32, #tpu.memory_space<vmem>>, vector<8x1024xf32>
    %3 = vector.broadcast %0 : f32 to vector<8x1024xf32>
    %4 = arith.mulf %1, %3 : vector<8x1024xf32>
    %5 = arith.subf %2, %4 : vector<8x1024xf32>
    %c0_4 = arith.constant 0 : index
    %c0_5 = arith.constant 0 : index
    %6 = vector.load %arg4[%c0_4, %c0_5] : memref<8x1024xf32, #tpu.memory_space<vmem>>, vector<8x1024xf32>
    tpu.vector_store %arg4[%c0_4, %c0_5], %5 {strides = array<i32>} : memref<8x1024xf32, #tpu.memory_space<vmem>>, vector<8x1024xf32>,
    return
  }
  func.func @transform_0(%arg0: i32) -> i32 {
    %c0_i32 = arith.constant 0 : i32
    %c0_i32_0 = arith.constant 0 : i32
    return %c0_i32 : i32
  }
  func.func @transform_1(%arg0: i32) -> (i32, i32) {
    %c0_i32 = arith.constant 0 : i32
    %c0_i32_0 = arith.constant 0 : i32
    return %arg0, %c0_i32 : i32, i32
  }
  func.func @transform_2(%arg0: i32) -> (i32, i32) {
    %c0_i32 = arith.constant 0 : i32
    %c0_i32_0 = arith.constant 0 : i32
    return %arg0, %c0_i32 : i32, i32
  }
  func.func @transform_3(%arg0: i32) -> (i32, i32) {
    %c0_i32 = arith.constant 0 : i32
    %c0_i32_0 = arith.constant 0 : i32
    return %arg0, %c0_i32 : i32, i32
  }
}

</mosaic_0001>

<llo_original>
// kernel: rho_connection_forward.1
$region0: #{rho_connection_forward.1}
  #allocation0 [shape = 'u32[]', space=smem, size = 0x4, offset = 0x4, fixed_abs, tag = 'smem constant byte address 0x4 - core index']
  #allocation1 [shape = 'u32[144,128]{1,0:T(1,128)}', space=vmem, size = 0x12000, scoped, tag = 'internal scratch']
  #allocation2 [shape = 'f32[1]{0:T(128)S(6)}', space=smem, size = 0x200, scoped, tag = 'scoped memory for rho_connection_forward.1']
  %s0 = inlined_call_operand.<no memory space> [shape: f32[1], index: 0, kind: input, shape index: {}]
  %s1 = inlined_call_operand.vmem [shape: f32[8,1024], index: 1, kind: input, shape index: {}]
  %s2 = inlined_call_operand.vmem [shape: f32[8,1024], index: 2, kind: input, shape index: {}]
  %s3 = inlined_call_operand.vmem [shape: f32[8,1024], index: 3, kind: output, shape index: {}]
  %s4 = sld [smem:[#allocation0]]
  $region22: #{rho_connection_forward.1} parent=0
    _
  %s6 = ssub.s32 1, %s4
  %s7 = scalar_select 0, %s6, %s4
  %8 = sst [smem:[#allocation2]] %s0
  // Predicated region
  $region2: #{rho_connection_forward.1} parent=0 // pred_check
    _
  $region3: #{rho_connection_forward.1} parent=0 // pred_check_branch
    %10 = sbr.rel (0) target = $region5
  $region4: #{rho_connection_forward.1} parent=0 // pred_region
    _
  $region5: #{rho_connection_forward.1} parent=0 // pred_fallthru
    _
  // Predicated region
  $region6: #{rho_connection_forward.1} parent=0 // pred_check
    _
  $region7: #{rho_connection_forward.1} parent=0 // pred_check_branch
    %12 = sbr.rel (0) target = $region9
  $region8: #{rho_connection_forward.1} parent=0 // pred_region
    _
  $region9: #{rho_connection_forward.1} parent=0 // pred_fallthru
    _
  // Predicated region
  $region10: #{rho_connection_forward.1} parent=0 // pred_check
    _
  $region11: #{rho_connection_forward.1} parent=0 // pred_check_branch
    %14 = sbr.rel (0) target = $region13
  $region12: #{rho_connection_forward.1} parent=0 // pred_region
    _
  $region13: #{rho_connection_forward.1} parent=0 // pred_fallthru
    _
  %s15 = sld [smem:[#allocation2]]
  %v16 = vld [vmem:[%s1] sm:$0xff]
  %v17 = vld [vmem:[%s1 + $0x8] sm:$0xff]
  %v18 = vld [vmem:[%s1 + $0x10] sm:$0xff]
  %v19 = vld [vmem:[%s1 + $0x18] sm:$0xff]
  %v20 = vld [vmem:[%s1 + $0x20] sm:$0xff]
  %v21 = vld [vmem:[%s1 + $0x28] sm:$0xff]
  %v22 = vld [vmem:[%s1 + $0x30] sm:$0xff]
  %v23 = vld [vmem:[%s1 + $0x38] sm:$0xff]
  %v24 = vld [vmem:[%s2] sm:$0xff]
  %v25 = vld [vmem:[%s2 + $0x8] sm:$0xff]
  %v26 = vld [vmem:[%s2 + $0x10] sm:$0xff]
  %v27 = vld [vmem:[%s2 + $0x18] sm:$0xff]
  %v28 = vld [vmem:[%s2 + $0x20] sm:$0xff]
  %v29 = vld [vmem:[%s2 + $0x28] sm:$0xff]
  %v30 = vld [vmem:[%s2 + $0x30] sm:$0xff]
  %v31 = vld [vmem:[%s2 + $0x38] sm:$0xff]
  %v32 = vstv %s15
  %v33 = vmul.f32 %v16, %v32
  %v34 = vmul.f32 %v17, %v32
  %v35 = vmul.f32 %v18, %v32
  %v36 = vmul.f32 %v19, %v32
  %v37 = vmul.f32 %v20, %v32
  %v38 = vmul.f32 %v21, %v32
  %v39 = vmul.f32 %v22, %v32
  %v40 = vmul.f32 %v23, %v32
  %v41 = vsub.f32 %v24, %v33
  %v42 = vsub.f32 %v25, %v34
  %v43 = vsub.f32 %v26, %v35
  %v44 = vsub.f32 %v27, %v36
  %v45 = vsub.f32 %v28, %v37
  %v46 = vsub.f32 %v29, %v38
  %v47 = vsub.f32 %v30, %v39
  %v48 = vsub.f32 %v31, %v40
  %49 = vst [vmem:[%s3] sm:$0xff] %v41
  %50 = vst [vmem:[%s3 + $0x8] sm:$0xff] %v42
  %51 = vst [vmem:[%s3 + $0x10] sm:$0xff] %v43
  %52 = vst [vmem:[%s3 + $0x18] sm:$0xff] %v44
  %53 = vst [vmem:[%s3 + $0x20] sm:$0xff] %v45
  %54 = vst [vmem:[%s3 + $0x28] sm:$0xff] %v46
  %55 = vst [vmem:[%s3 + $0x30] sm:$0xff] %v47
  %56 = vst [vmem:[%s3 + $0x38] sm:$0xff] %v48
  // Predicated region
  $region14: #{rho_connection_forward.1} parent=0 // pred_check
    _
  $region15: #{rho_connection_forward.1} parent=0 // pred_check_branch
    %58 = sbr.rel (0) target = $region17
  $region16: #{rho_connection_forward.1} parent=0 // pred_region
    _
  $region17: #{rho_connection_forward.1} parent=0 // pred_fallthru
    _
  // Predicated region
  $region18: #{rho_connection_forward.1} parent=0 // pred_check
    _
  $region19: #{rho_connection_forward.1} parent=0 // pred_check_branch
    %60 = sbr.rel (0) target = $region21
  $region20: #{rho_connection_forward.1} parent=0 // pred_region
    _
  $region21: #{rho_connection_forward.1} parent=0 // pred_fallthru
    _

</llo_original>
